<compile_context>
chip_gen: v5e
topology: v5e:2x2
jax: 0.10.0
libtpu: 0.0.40
codegen_flags: <defaults>
</compile_context>

<pallas_src>
import math
from functools import partial

import numpy as np
import jax
import jax.numpy as jnp
from jax.experimental import pallas as pl
from jax.experimental.pallas import tpu as pltpu


# bf16 operands into the MXU (f32 accumulation) per v6e/v7x guidance.
MATMUL_INPUT_DTYPE = jnp.bfloat16


def _round_up(x, m):
    return ((x + m - 1) // m) * m


def _batch_block(B, C, HW, budget_bytes=4 << 20):
    """Largest batch-block that keeps one (Bb, C, HW) f32 tile under budget."""
    per = max(C * HW * 4, 1)
    bb = max(1, min(B, budget_bytes // per))
    while B % bb:
        bb -= 1
    return bb


# ----------------------------- tiled MXU matmul ------------------------------

def _mm_kernel(a_ref, b_ref, bias_ref, o_ref, acc_ref):
    @pl.when(pl.program_id(2) == 0)
    def _init():
        acc_ref[...] = jnp.zeros_like(acc_ref)

    acc_ref[...] += jnp.dot(a_ref[...], b_ref[...],
                            preferred_element_type=jnp.float32)

    @pl.when(pl.program_id(2) == pl.num_programs(2) - 1)
    def _fin():
        o_ref[...] = (acc_ref[...] + bias_ref[...]).astype(o_ref.dtype)


def pallas_matmul(a, b, bias=None, *, tm=128, tn=256, tk=128,
                  out_dtype=jnp.float32):
    """a:(M,K) @ b:(K,N) + bias(M,) -> (M,N).

    Tiled over (M,N,K) with a VMEM f32 accumulator; inputs fed in bf16.
    Tile defaults: tk=128 (v5e MXU width), tn<=256 (v7x 64MiB VMEM / 256-wide
    MXU), tm<=128; all clamped to the (padded) problem size.
    """
    M, K = a.shape
    K2, N = b.shape
    assert K == K2
    if bias is None:
        bias = jnp.zeros((M,), jnp.float32)

    tm = min(tm, _round_up(M, 8))
    tn = min(tn, _round_up(N, 128))
    tk = min(tk, _round_up(K, 128))
    Mp, Np, Kp = _round_up(M, tm), _round_up(N, tn), _round_up(K, tk)

    a_p = jnp.pad(a.astype(MATMUL_INPUT_DTYPE), ((0, Mp - M), (0, Kp - K)))
    b_p = jnp.pad(b.astype(MATMUL_INPUT_DTYPE), ((0, Kp - K), (0, Np - N)))
    bias_p = jnp.pad(bias.astype(jnp.float32).reshape(M, 1), ((0, Mp - M), (0, 0)))

    grid = (Mp // tm, Np // tn, Kp // tk)
    cost = pl.CostEstimate(
        flops=2 * Mp * Np * Kp,
        transcendentals=0,
        bytes_accessed=a_p.size * a_p.dtype.itemsize
        + b_p.size * b_p.dtype.itemsize + Mp * Np * 4)

    out = pl.pallas_call(
        _mm_kernel,
        out_shape=jax.ShapeDtypeStruct((Mp, Np), out_dtype),
        grid=grid,
        in_specs=[pl.BlockSpec((tm, tk), lambda i, j, k: (i, k)),
                  pl.BlockSpec((tk, tn), lambda i, j, k: (k, j)),
                  pl.BlockSpec((tm, 1), lambda i, j, k: (i, 0))],
        out_specs=pl.BlockSpec((tm, tn), lambda i, j, k: (i, j)),
        scratch_shapes=[pltpu.VMEM((tm, tn), jnp.float32)],
        compiler_params=pltpu.CompilerParams(
            dimension_semantics=("parallel", "parallel", "arbitrary")),
        cost_estimate=cost,
    )(a_p, b_p, bias_p)
    return out[:M, :N]


# ------------------------- GroupNorm + Mish (fused) --------------------------

def _gn_mish_kernel(x_ref, g_ref, b_ref, o_ref, *, groups, eps):
    x = x_ref[...]                                   # (Bb, C, HW)
    Bb, C, HW = x.shape
    cg = C // groups
    # One-hot group-membership masks built in-kernel (avoids (C,HW)->(G,cg,HW)
    # reshape that would cross (8,128) tile boundaries).
    c1 = jax.lax.broadcasted_iota(jnp.int32, (C, groups), 0) // cg
    g1 = jax.lax.broadcasted_iota(jnp.int32, (C, groups), 1)
    m_cg = (c1 == g1).astype(jnp.float32)            # (C, G)
    g2 = jax.lax.broadcasted_iota(jnp.int32, (groups, C), 0)
    c2 = jax.lax.broadcasted_iota(jnp.int32, (groups, C), 1) // cg
    m_gc = (g2 == c2).astype(jnp.float32)            # (G, C)

    denom = cg * HW
    s1 = jnp.sum(x, axis=2)                          # (Bb, C) lane reduction
    gmean = jnp.dot(s1, m_cg, preferred_element_type=jnp.float32) / denom
    cmean = jnp.dot(gmean, m_gc, preferred_element_type=jnp.float32)   # (Bb, C)
    d = x - cmean[:, :, None]
    s2 = jnp.sum(d * d, axis=2)
    gvar = jnp.dot(s2, m_cg, preferred_element_type=jnp.float32) / denom
    cvar = jnp.dot(gvar, m_gc, preferred_element_type=jnp.float32)
    xn = d * jax.lax.rsqrt(cvar[:, :, None] + eps)
    y = xn * g_ref[...][None, :, :] + b_ref[...][None, :, :]
    o_ref[...] = y * jnp.tanh(jax.nn.softplus(y))    # fused Mish


def groupnorm_mish(x, gamma, beta, groups=8, eps=1e-5):
    B, C, H, W = x.shape
    HW = H * W
    xr = x.reshape(B, C, HW).astype(jnp.float32)
    Bb = _batch_block(B, C, HW)
    spec = pl.BlockSpec((Bb, C, HW), lambda i: (i, 0, 0))
    out = pl.pallas_call(
        partial(_gn_mish_kernel, groups=groups, eps=eps),
        out_shape=jax.ShapeDtypeStruct((B, C, HW), jnp.float32),
        grid=(B // Bb,),
        in_specs=[spec,
                  pl.BlockSpec((C, 1), lambda i: (0, 0)),
                  pl.BlockSpec((C, 1), lambda i: (0, 0))],
        out_specs=spec,
        compiler_params=pltpu.CompilerParams(dimension_semantics=("parallel",)),
    )(xr, gamma.reshape(C, 1), beta.reshape(C, 1))
    return out.reshape(B, C, H, W)


# ------------------------- channel LayerNorm (PreNorm) -----------------------

def _ln_kernel(x_ref, g_ref, b_ref, o_ref, *, eps):
    x = x_ref[...]                                   # (Bb, C, HW)
    mean = jnp.mean(x, axis=1, keepdims=True)
    var = jnp.mean(jnp.square(x - mean), axis=1, keepdims=True)
    # NOTE: this module's LayerNorm is (x - mean) / (std + eps) -- keep it.
    o_ref[...] = ((x - mean) / (jnp.sqrt(var) + eps)) * g_ref[...][None, :, :] \
        + b_ref[...][None, :, :]


def layernorm_channels(x, g, b, eps=1e-5):
    B, C, H, W = x.shape
    HW = H * W
    xr = x.reshape(B, C, HW).astype(jnp.float32)
    Bb = _batch_block(B, C, HW)
    spec = pl.BlockSpec((Bb, C, HW), lambda i: (i, 0, 0))
    out = pl.pallas_call(
        partial(_ln_kernel, eps=eps),
        out_shape=jax.ShapeDtypeStruct((B, C, HW), jnp.float32),
        grid=(B // Bb,),
        in_specs=[spec,
                  pl.BlockSpec((C, 1), lambda i: (0, 0)),
                  pl.BlockSpec((C, 1), lambda i: (0, 0))],
        out_specs=spec,
        compiler_params=pltpu.CompilerParams(dimension_semantics=("parallel",)),
    )(xr, g.reshape(C, 1), b.reshape(C, 1))
    return out.reshape(B, C, H, W)


# ------------------------------ linear attention -----------------------------

def _linattn_kernel(q_ref, k_ref, v_ref, o_ref):
    q = q_ref[...]                                   # (Hb, d, n)
    k = jax.nn.softmax(k_ref[...], axis=-1)          # softmax over n (reference)
    v = v_ref[...]
    context = jnp.einsum('hdn,hen->hde', k, v, preferred_element_type=jnp.float32)
    o_ref[...] = jnp.einsum('hde,hdn->hen', context, q,
                            preferred_element_type=jnp.float32)


def linear_attention_core(q, k, v):
    BH, d, n = q.shape
    if BH <= 16:
        Hb = BH
    elif BH % 8 == 0:
        Hb = 8
    else:
        Hb = 1
    spec = pl.BlockSpec((Hb, d, n), lambda i: (i, 0, 0))
    return pl.pallas_call(
        _linattn_kernel,
        out_shape=jax.ShapeDtypeStruct((BH, d, n), jnp.float32),
        grid=(BH // Hb,),
        in_specs=[spec, spec, spec],
        out_specs=spec,
        compiler_params=pltpu.CompilerParams(dimension_semantics=("parallel",)),
    )(q.astype(jnp.float32), k.astype(jnp.float32), v.astype(jnp.float32))


# ---------------------------------- q_sample ---------------------------------

def _qsample_kernel(a_ref, s_ref, x_ref, n_ref, o_ref):
    o_ref[...] = a_ref[...] * x_ref[...] + s_ref[...] * n_ref[...]


def q_sample(x, noise, sqrt_ac_t, sqrt_om_ac_t):
    B, C, H, W = x.shape
    HW = H * W
    xr = x.reshape(B, C, HW).astype(jnp.float32)
    nr = noise.reshape(B, C, HW).astype(jnp.float32)
    a3 = sqrt_ac_t.astype(jnp.float32).reshape(B, 1, 1)
    s3 = sqrt_om_ac_t.astype(jnp.float32).reshape(B, 1, 1)
    Bb = _batch_block(B, C, HW)
    spec = pl.BlockSpec((Bb, C, HW), lambda i: (i, 0, 0))
    cspec = pl.BlockSpec((Bb, 1, 1), lambda i: (i, 0, 0))
    out = pl.pallas_call(
        _qsample_kernel,
        out_shape=jax.ShapeDtypeStruct((B, C, HW), jnp.float32),
        grid=(B // Bb,),
        in_specs=[cspec, cspec, spec, spec],
        out_specs=spec,
        compiler_params=pltpu.CompilerParams(dimension_semantics=("parallel",)),
    )(a3, s3, xr, nr)
    return out.reshape(B, C, H, W)


# ---------------------------------- L1 loss ----------------------------------

def _l1_kernel(a_ref, b_ref, o_ref):
    @pl.when(pl.program_id(0) == 0)
    def _init():
        o_ref[0, 0] = 0.0
    o_ref[0, 0] += jnp.sum(jnp.abs(a_ref[...] - b_ref[...]))


def l1_loss(noise, recon, *, rows_per_block=256):
    n = noise.size
    af = noise.reshape(-1).astype(jnp.float32)
    bf = recon.reshape(-1).astype(jnp.float32)
    lane = 128
    rows = pl.cdiv(n, lane)
    tm = min(rows_per_block, max(8, pl.next_power_of_2(rows)))
    rows_p = _round_up(rows, tm)
    pad = rows_p * lane - n
    af = jnp.pad(af, (0, pad)).reshape(rows_p, lane)
    bf = jnp.pad(bf, (0, pad)).reshape(rows_p, lane)
    nblk = rows_p // tm
    s = pl.pallas_call(
        _l1_kernel,
        out_shape=jax.ShapeDtypeStruct((1, 1), jnp.float32),
        grid=(nblk,),
        in_specs=[pl.BlockSpec((tm, lane), lambda i: (i, 0)),
                  pl.BlockSpec((tm, lane), lambda i: (i, 0))],
        out_specs=pl.BlockSpec(memory_space=pltpu.MemorySpace.SMEM),
        compiler_params=pltpu.CompilerParams(dimension_semantics=("arbitrary",)),
    )(af, bf)
    return s[0, 0] / n


# ----------------------------- JAX glue: convolutions ------------------------

def conv2d(x, w, b=None, stride=1, padding=0):
    """NCHW conv via lane-dense im2col + tiled Pallas matmul.  w: (O, Cin, kh, kw).

    Output is produced as (Cout, B*Ho*Wo): channels on sublanes, flattened
    spatial on lanes (unmasked 128-lane stores, no NHWC->NCHW transpose).
    """
    B, C, H, W = x.shape
    O, Cin, kh, kw = w.shape
    assert Cin == C
    Ho = (H + 2 * padding - kh) // stride + 1
    Wo = (W + 2 * padding - kw) // stride + 1
    if padding:
        x = jnp.pad(x, ((0, 0), (0, 0), (padding, padding), (padding, padding)))
    # TODO(synk): the im2col patch matrix still makes one HBM pass; fully fusing
    # the gather into the matmul kernel (VMEM-resident padded input slab) would
    # remove it.
    cols = []
    for i in range(kh):
        for j in range(kw):
            cols.append(x[:, :, i:i + stride * Ho:stride, j:j + stride * Wo:stride])
    pat = jnp.stack(cols, axis=0).transpose(2, 0, 1, 3, 4)     # (C, kh*kw, B, Ho, Wo)
    pat = pat.reshape(C * kh * kw, B * Ho * Wo)
    wm = w.reshape(O, C * kh * kw)
    out = pallas_matmul(wm, pat, b)                            # (O, B*Ho*Wo)
    return out.reshape(O, B, Ho, Wo).transpose(1, 0, 2, 3)


def conv_transpose2d(x, w, b, stride=2, padding=1):
    """ConvTranspose2d(k=4, s=2, p=1) decomposed into 4 stride-1 2x2 sub-convs
    (no zero-insertion: 4x less MXU work / im2col traffic).  w: (Cin, Cout, 4, 4)."""
    B, C, H, W = x.shape
    Cin, Cout, kh, kw = w.shape
    assert Cin == C and kh == 4 and kw == 4 and stride == 2 and padding == 1
    wp = w.transpose(1, 0, 2, 3)                               # (Cout, Cin, 4, 4)
    xp = jnp.pad(x, ((0, 0), (0, 0), (1, 1), (1, 1)))
    outs = {}
    for rp in (0, 1):         # output row parity
        for cp in (0, 1):     # output col parity
            ksub = wp[:, :, (3 - rp)::-2, :][:, :, :, (3 - cp)::-2]   # (Cout,Cin,2,2)
            xsub = xp[:, :, rp:rp + H + 1, cp:cp + W + 1]
            outs[(rp, cp)] = conv2d(xsub, ksub, b, stride=1, padding=0)
    row0 = jnp.stack([outs[(0, 0)], outs[(0, 1)]], axis=-1)    # (B,Cout,H,W,2)
    row1 = jnp.stack([outs[(1, 0)], outs[(1, 1)]], axis=-1)
    out = jnp.stack([row0, row1], axis=3)                      # (B,Cout,H,2,W,2)
    return out.reshape(B, Cout, 2 * H, 2 * W)


def mish(x):
    # TODO(synk): time-MLP Mish on tiny (B, dim) tensors runs in plain JAX;
    # all spatial Mish activations are fused into the GroupNorm Pallas kernel.
    return x * jnp.tanh(jax.nn.softplus(x))


def linear(x, w, b):
    # out = x @ w.T + b computed as (w @ x.T + b_row).T so bias stays per-row.
    return pallas_matmul(w, x.T, b).T


def sinusoidal_emb(t, dim):
    half = dim // 2
    scale = math.log(10000) / (half - 1)
    emb = jnp.exp(jnp.arange(half, dtype=jnp.float32) * -scale)
    emb = t[:, None] * emb[None, :]
    return jnp.concatenate([jnp.sin(emb), jnp.cos(emb)], axis=-1)


# ----------------------------- parameter init --------------------------------

def _w(key, shape, scale=0.1):
    return jax.random.normal(key, shape, jnp.float32) * scale


def init_conv(key, out_c, in_c, k, bias=True):
    return {'w': _w(key, (out_c, in_c, k, k)),
            'b': jnp.zeros((out_c,), jnp.float32) if bias else None}


def init_convT(key, in_c, out_c, k):
    return {'w': _w(key, (in_c, out_c, k, k)),
            'b': jnp.zeros((out_c,), jnp.float32)}


def init_linear(key, out_f, in_f):
    return {'w': _w(key, (out_f, in_f)), 'b': jnp.zeros((out_f,), jnp.float32)}


def init_block(key, din, dout):
    return {'conv': init_conv(key, dout, din, 3),
            'gn_g': jnp.ones((dout,), jnp.float32),
            'gn_b': jnp.zeros((dout,), jnp.float32)}


def init_resnet(key, din, dout, time_dim):
    k1, k2, k3, k4 = jax.random.split(key, 4)
    p = {'mlp': init_linear(k1, dout, time_dim),
         'block1': init_block(k2, din, dout),
         'block2': init_block(k3, dout, dout)}
    if din != dout:
        p['res'] = init_conv(k4, dout, din, 1)
    return p


def init_attn(key, dim, heads=4, dim_head=32):
    k1, k2 = jax.random.split(key)
    hd = heads * dim_head
    return {'ln_g': jnp.ones((dim,), jnp.float32),
            'ln_b': jnp.zeros((dim,), jnp.float32),
            'qkv': init_conv(k1, hd * 3, dim, 1, bias=False),
            'out': init_conv(k2, dim, hd, 1, bias=True),
            'heads': heads, 'dim_head': dim_head}


def init_unet_params(key, dim=8, dim_mults=(1, 2), channels=3, out_dim=None):
    dims = [channels] + [dim * m for m in dim_mults]
    in_out = list(zip(dims[:-1], dims[1:]))
    time_dim = dim
    keys = iter(jax.random.split(key, 64))
    P = {'dim': dim,
         'time_mlp': {'l1': init_linear(next(keys), dim * 4, dim),
                      'l2': init_linear(next(keys), dim, dim * 4)}}
    n_res = len(in_out)
    downs = []
    for ind, (din, dout) in enumerate(in_out):
        is_last = ind >= n_res - 1
        d = {'res1': init_resnet(next(keys), din, dout, time_dim),
             'res2': init_resnet(next(keys), dout, dout, time_dim),
             'attn': init_attn(next(keys), dout)}
        if not is_last:
            d['down'] = init_conv(next(keys), dout, dout, 3)
        downs.append(d)
    P['downs'] = downs
    mid_dim = dims[-1]
    P['mid1'] = init_resnet(next(keys), mid_dim, mid_dim, time_dim)
    P['mid_attn'] = init_attn(next(keys), mid_dim)
    P['mid2'] = init_resnet(next(keys), mid_dim, mid_dim, time_dim)
    ups = []
    for ind, (din, dout) in enumerate(reversed(in_out[1:])):
        is_last = ind >= n_res - 1
        u = {'res1': init_resnet(next(keys), dout * 2, din, time_dim),
             'res2': init_resnet(next(keys), din, din, time_dim),
             'attn': init_attn(next(keys), din)}
        if not is_last:
            u['up'] = init_convT(next(keys), din, din, 4)
        ups.append(u)
    P['ups'] = ups
    out_dim = channels if out_dim is None else out_dim
    P['final_block'] = init_block(next(keys), dim, dim)
    P['final_conv'] = init_conv(next(keys), out_dim, dim, 1)
    return P


# ----------------------------- model forward ---------------------------------

def block_fwd(p, x):
    x = conv2d(x, p['conv']['w'], p['conv']['b'], stride=1, padding=1)
    return groupnorm_mish(x, p['gn_g'], p['gn_b'], groups=8)


def resnet_fwd(p, x, temb):
    h = block_fwd(p['block1'], x)
    te = linear(mish(temb), p['mlp']['w'], p['mlp']['b'])
    h = h + te[:, :, None, None]
    h = block_fwd(p['block2'], h)
    if 'res' in p:
        res = conv2d(x, p['res']['w'], p['res']['b'], stride=1, padding=0)
    else:
        res = x
    return h + res


def attn_residual_fwd(p, x):
    heads, dim_head = p['heads'], p['dim_head']
    B, C, H, W = x.shape
    xn = layernorm_channels(x, p['ln_g'], p['ln_b'])
    qkv = conv2d(xn, p['qkv']['w'], None, stride=1, padding=0)
    qkv = qkv.reshape(B, 3, heads, dim_head, H * W)
    q = qkv[:, 0].reshape(B * heads, dim_head, H * W)
    k = qkv[:, 1].reshape(B * heads, dim_head, H * W)
    v = qkv[:, 2].reshape(B * heads, dim_head, H * W)
    out = linear_attention_core(q, k, v)
    out = out.reshape(B, heads * dim_head, H, W)
    out = conv2d(out, p['out']['w'], p['out']['b'], stride=1, padding=0)
    return out + x


def unet_fwd(P, x, t):
    dim = P['dim']
    emb = sinusoidal_emb(t.astype(jnp.float32), dim)
    temb = linear(emb, P['time_mlp']['l1']['w'], P['time_mlp']['l1']['b'])
    temb = mish(temb)
    temb = linear(temb, P['time_mlp']['l2']['w'], P['time_mlp']['l2']['b'])

    h = []
    for d in P['downs']:
        x = resnet_fwd(d['res1'], x, temb)
        x = resnet_fwd(d['res2'], x, temb)
        x = attn_residual_fwd(d['attn'], x)
        h.append(x)
        if 'down' in d:
            x = conv2d(x, d['down']['w'], d['down']['b'], stride=2, padding=1)

    x = resnet_fwd(P['mid1'], x, temb)
    x = attn_residual_fwd(P['mid_attn'], x)
    x = resnet_fwd(P['mid2'], x, temb)

    for u in P['ups']:
        x = jnp.concatenate([x, h.pop()], axis=1)
        x = resnet_fwd(u['res1'], x, temb)
        x = resnet_fwd(u['res2'], x, temb)
        x = attn_residual_fwd(u['attn'], x)
        if 'up' in u:
            x = conv_transpose2d(x, u['up']['w'], u['up']['b'], stride=2, padding=1)

    x = block_fwd(P['final_block'], x)
    x = conv2d(x, P['final_conv']['w'], P['final_conv']['b'], stride=1, padding=0)
    return x


# ----------------------- GaussianDiffusion (mode='unc') ----------------------

def cosine_beta_schedule(timesteps, s=0.008):
    steps = timesteps + 1
    x = np.linspace(0, steps, steps)
    alphas_cumprod = np.cos((x / steps + s) / (1 + s) * np.pi * 0.5) ** 2
    alphas_cumprod = alphas_cumprod / alphas_cumprod[0]
    betas = 1 - alphas_cumprod[1:] / alphas_cumprod[:-1]
    return np.clip(betas, a_min=0, a_max=0.999)


def gaussian_diffusion_forward(params, consts, x, key):
    B = x.shape[0]
    k_t, k_n = jax.random.split(key)
    t = jax.random.randint(k_t, (B,), 0, consts['num_timesteps'])
    noise = jax.random.normal(k_n, x.shape, jnp.float32)
    a_t = consts['sqrt_alphas_cumprod'][t]
    s_t = consts['sqrt_one_minus_alphas_cumprod'][t]
    x_noisy = q_sample(x, noise, a_t, s_t)            # Pallas kernel
    x_recon = unet_fwd(params, x_noisy, t)            # Pallas conv/norm/attn kernels
    return l1_loss(noise, x_recon)                    # Pallas tiled reduction


# --------------------------------- main ---------------------------------------

if __name__ == "__main__":
    key = jax.random.PRNGKey(0)
    k_params, k_x, k_fwd = jax.random.split(key, 3)

    params = init_unet_params(k_params, dim=8, dim_mults=(1, 2), channels=3)

    timesteps = 10
    betas = cosine_beta_schedule(timesteps)
    alphas_cumprod = np.cumprod(1.0 - betas, axis=0)
    consts = {
        'num_timesteps': timesteps,
        'sqrt_alphas_cumprod': jnp.asarray(np.sqrt(alphas_cumprod), jnp.float32),
        'sqrt_one_minus_alphas_cumprod':
            jnp.asarray(np.sqrt(1.0 - alphas_cumprod), jnp.float32),
    }

    x = jax.random.normal(k_x, (2, 3, 16, 16), jnp.float32)   # NCHW

    loss = gaussian_diffusion_forward(params, consts, x, k_fwd)
    loss = jax.block_until_ready(loss)
    assert loss.shape == () and bool(jnp.isfinite(loss))
    print("KERNEL_OK")
</pallas_src>

<mosaic_0001>
module attributes {stable_mosaic.version = 11 : i64} {
  func.func @_qsample_kernel(%arg0: i32, %arg1: memref<2x1x1xf32, #tpu.memory_space<vmem>>, %arg2: memref<2x1x1xf32, #tpu.memory_space<vmem>>, %arg3: memref<2x3x256xf32, #tpu.memory_space<vmem>>, %arg4: memref<2x3x256xf32, #tpu.memory_space<vmem>>, %arg5: memref<2x3x256xf32, #tpu.memory_space<vmem>>) attributes {dimension_semantics = [#tpu.dimension_semantics<parallel>], iteration_bounds = array<i64: 1>, scalar_prefetch = 0 : i64, scratch_operands = 0 : i64, tpu.core_type = #tpu.core_type<tc>, window_params = [{transform_indices = @transform_0, window_bounds = array<i64: 2, 1, 1>}, {transform_indices = @transform_1, window_bounds = array<i64: 2, 1, 1>}, {transform_indices = @transform_2, window_bounds = array<i64: 2, 3, 256>}, {transform_indices = @transform_3, window_bounds = array<i64: 2, 3, 256>}, {transform_indices = @transform_4, window_bounds = array<i64: 2, 3, 256>}]} {
    %c0 = arith.constant 0 : index
    %c0_0 = arith.constant 0 : index
    %c0_1 = arith.constant 0 : index
    %0 = vector.load %arg1[%c0, %c0_0, %c0_1] : memref<2x1x1xf32, #tpu.memory_space<vmem>>, vector<2x1x1xf32>
    %c0_2 = arith.constant 0 : index
    %c0_3 = arith.constant 0 : index
    %c0_4 = arith.constant 0 : index
    %1 = vector.load %arg3[%c0_2, %c0_3, %c0_4] : memref<2x3x256xf32, #tpu.memory_space<vmem>>, vector<2x3x256xf32>
    %2 = vector.broadcast %0 : vector<2x1x1xf32> to vector<2x3x256xf32>
    %3 = arith.mulf %2, %1 : vector<2x3x256xf32>
    %c0_5 = arith.constant 0 : index
    %c0_6 = arith.constant 0 : index
    %c0_7 = arith.constant 0 : index
    %4 = vector.load %arg2[%c0_5, %c0_6, %c0_7] : memref<2x1x1xf32, #tpu.memory_space<vmem>>, vector<2x1x1xf32>
    %c0_8 = arith.constant 0 : index
    %c0_9 = arith.constant 0 : index
    %c0_10 = arith.constant 0 : index
    %5 = vector.load %arg4[%c0_8, %c0_9, %c0_10] : memref<2x3x256xf32, #tpu.memory_space<vmem>>, vector<2x3x256xf32>
    %6 = vector.broadcast %4 : vector<2x1x1xf32> to vector<2x3x256xf32>
    %7 = arith.mulf %6, %5 : vector<2x3x256xf32>
    %8 = arith.addf %3, %7 : vector<2x3x256xf32>
    %c0_11 = arith.constant 0 : index
    %c0_12 = arith.constant 0 : index
    %c0_13 = arith.constant 0 : index
    %9 = vector.load %arg5[%c0_11, %c0_12, %c0_13] : memref<2x3x256xf32, #tpu.memory_space<vmem>>, vector<2x3x256xf32>
    tpu.vector_store %arg5[%c0_11, %c0_12, %c0_13], %8 {strides = array<i32>} : memref<2x3x256xf32, #tpu.memory_space<vmem>>, vector<2x3x256xf32>,
    return
  }
  func.func @transform_0(%arg0: i32) -> (i32, i32, i32) {
    %c0_i32 = arith.constant 0 : i32
    %c0_i32_0 = arith.constant 0 : i32
    %c0_i32_1 = arith.constant 0 : i32
    return %arg0, %c0_i32, %c0_i32_0 : i32, i32, i32
  }
  func.func @transform_1(%arg0: i32) -> (i32, i32, i32) {
    %c0_i32 = arith.constant 0 : i32
    %c0_i32_0 = arith.constant 0 : i32
    %c0_i32_1 = arith.constant 0 : i32
    return %arg0, %c0_i32, %c0_i32_0 : i32, i32, i32
  }
  func.func @transform_2(%arg0: i32) -> (i32, i32, i32) {
    %c0_i32 = arith.constant 0 : i32
    %c0_i32_0 = arith.constant 0 : i32
    %c0_i32_1 = arith.constant 0 : i32
    return %arg0, %c0_i32, %c0_i32_0 : i32, i32, i32
  }
  func.func @transform_3(%arg0: i32) -> (i32, i32, i32) {
    %c0_i32 = arith.constant 0 : i32
    %c0_i32_0 = arith.constant 0 : i32
    %c0_i32_1 = arith.constant 0 : i32
    return %arg0, %c0_i32, %c0_i32_0 : i32, i32, i32
  }
  func.func @transform_4(%arg0: i32) -> (i32, i32, i32) {
    %c0_i32 = arith.constant 0 : i32
    %c0_i32_0 = arith.constant 0 : i32
    %c0_i32_1 = arith.constant 0 : i32
    return %arg0, %c0_i32, %c0_i32_0 : i32, i32, i32
  }
}

</mosaic_0001>

<llo_original>
// kernel: tpu_custom_call.1
$region0: #{tpu_custom_call.1}
  #allocation0 [shape = 'u32[]', space=smem, size = 0x4, offset = 0x4, fixed_abs, tag = 'smem constant byte address 0x4 - core index']
  #allocation1 [shape = 'u32[72,128]{1,0:T(1,128)}', space=vmem, size = 0x9000, scoped, tag = 'internal scratch']
  %s0 = inlined_call_operand.vmem [shape: f32[2,1,1], index: 0, kind: input, shape index: {}]
  %s1 = inlined_call_operand.vmem [shape: f32[2,1,1], index: 1, kind: input, shape index: {}]
  %s2 = inlined_call_operand.vmem [shape: f32[2,3,256], index: 2, kind: input, shape index: {}]
  %s3 = inlined_call_operand.vmem [shape: f32[2,3,256], index: 3, kind: input, shape index: {}]
  %s4 = inlined_call_operand.vmem [shape: f32[2,3,256], index: 4, kind: output, shape index: {}]
  %s5 = sld [smem:[#allocation0]]
  $region26: #{tpu_custom_call.1} parent=0
    _
  %s7 = ssub.s32 1, %s5
  %s8 = scalar_select 0, %s7, %s5
  // Predicated region
  $region2: #{tpu_custom_call.1} parent=0 // pred_check
    _
  $region3: #{tpu_custom_call.1} parent=0 // pred_check_branch
    %10 = sbr.rel (0) target = $region5
  $region4: #{tpu_custom_call.1} parent=0 // pred_region
    _
  $region5: #{tpu_custom_call.1} parent=0 // pred_fallthru
    _
  // Predicated region
  $region6: #{tpu_custom_call.1} parent=0 // pred_check
    _
  $region7: #{tpu_custom_call.1} parent=0 // pred_check_branch
    %12 = sbr.rel (0) target = $region9
  $region8: #{tpu_custom_call.1} parent=0 // pred_region
    _
  $region9: #{tpu_custom_call.1} parent=0 // pred_fallthru
    _
  // Predicated region
  $region10: #{tpu_custom_call.1} parent=0 // pred_check
    _
  $region11: #{tpu_custom_call.1} parent=0 // pred_check_branch
    %14 = sbr.rel (0) target = $region13
  $region12: #{tpu_custom_call.1} parent=0 // pred_region
    _
  $region13: #{tpu_custom_call.1} parent=0 // pred_fallthru
    _
  // Predicated region
  $region14: #{tpu_custom_call.1} parent=0 // pred_check
    _
  $region15: #{tpu_custom_call.1} parent=0 // pred_check_branch
    %16 = sbr.rel (0) target = $region17
  $region16: #{tpu_custom_call.1} parent=0 // pred_region
    _
  $region17: #{tpu_custom_call.1} parent=0 // pred_fallthru
    _
  %v17 = vld [vmem:[%s0] sm:$0x1]
  %v18 = vld [vmem:[%s0 + $0x1] sm:$0x1]
  %v19 = vld [vmem:[%s2] sm:$0x77]
  %v20 = vld [vmem:[%s2 + $0x8] sm:$0x77]
  %v23 = vperm.slane %v17, 0
  %v24 = vperm.slane %v18, 0
  %25 = vset.pattern.permute.xlu0 0
  %26 = vperm.xlu0 %25, %v23
  %v27 = vpop.permute.xlu0 %26
  %29 = vset.pattern.permute.xlu0 0
  %30 = vperm.xlu0 %29, %v24
  %v31 = vpop.permute.xlu0 %30
  %v33 = vmul.f32 %v27, %v19
  %v34 = vmul.f32 %v31, %v20
  %v35 = vld [vmem:[%s1] sm:$0x1]
  %v36 = vld [vmem:[%s1 + $0x1] sm:$0x1]
  %v37 = vld [vmem:[%s3] sm:$0x77]
  %v38 = vld [vmem:[%s3 + $0x8] sm:$0x77]
  %v41 = vperm.slane %v35, 0
  %v42 = vperm.slane %v36, 0
  %43 = vset.pattern.permute.xlu0 0
  %44 = vperm.xlu0 %43, %v41
  %v45 = vpop.permute.xlu0 %44
  %47 = vset.pattern.permute.xlu0 0
  %48 = vperm.xlu0 %47, %v42
  %v49 = vpop.permute.xlu0 %48
  %v51 = vmul.f32 %v45, %v37
  %v52 = vmul.f32 %v49, %v38
  %v53 = vadd.f32 %v33, %v51
  %v54 = vadd.f32 %v34, %v52
  %55 = vst [vmem:[%s4] sm:$0x77] %v53
  %56 = vst [vmem:[%s4 + $0x8] sm:$0x77] %v54
  // Predicated region
  $region18: #{tpu_custom_call.1} parent=0 // pred_check
    _
  $region19: #{tpu_custom_call.1} parent=0 // pred_check_branch
    %58 = sbr.rel (0) target = $region21
  $region20: #{tpu_custom_call.1} parent=0 // pred_region
    _
  $region21: #{tpu_custom_call.1} parent=0 // pred_fallthru
    _
  // Predicated region
  $region22: #{tpu_custom_call.1} parent=0 // pred_check
    _
  $region23: #{tpu_custom_call.1} parent=0 // pred_check_branch
    %60 = sbr.rel (0) target = $region25
  $region24: #{tpu_custom_call.1} parent=0 // pred_region
    _
  $region25: #{tpu_custom_call.1} parent=0 // pred_fallthru
    _

</llo_original>
